<compile_context>
chip_gen: v6e
topology: v6e:2x2x1
jax: 0.10.0
libtpu: 0.0.40
codegen_flags: <defaults>
</compile_context>

<pallas_src>
import functools

import jax
import jax.numpy as jnp
from jax import lax
from jax.experimental import pallas as pl
from jax.experimental.pallas import tpu as pltpu

LANE = 128
SUBLANES = 8
CHUNK_ROWS = 512                      # inner accumulation chunk: 512 x 128 elems
TARGET_BLOCK_BYTES = 4 << 20          # ~4 MiB per stream per pipeline buffer


def _round_up(x, m):
    return ((x + m - 1) // m) * m


def _dice_kernel(p_ref, t_ref, o_ref, *, block_rows, chunk_rows, n_chunks,
                 rows_valid, rem_cols, needs_mask):
    c = pl.program_id(0)              # core-chunk axis ("parallel")
    b = pl.program_id(1)              # block axis within a core-chunk ("arbitrary")
    bpc = pl.num_programs(1)

    @pl.when(b == 0)
    def _init():
        o_ref[...] = jnp.zeros_like(o_ref)

    logical_blk = c * bpc + b
    base_row = logical_blk * block_rows

    def accumulate(masked):
        def chunk(k, carry):
            r0 = pl.multiple_of(k * chunk_rows, chunk_rows)
            p = p_ref[pl.ds(r0, chunk_rows), :].astype(jnp.float32)
            t = t_ref[pl.ds(r0, chunk_rows), :].astype(jnp.float32)
            # sigmoid(x) = 0.5*tanh(0.5*x) + 0.5 : single EUP transcendental.
            p = 0.5 * jnp.tanh(0.5 * p) + 0.5
            if masked:
                # Row/col-decomposed validity (no flat element index -> no
                # int32 overflow for large tensors).  Handles the ragged tail,
                # partial edge blocks and fully-invalid phantom blocks.
                row = (base_row + r0
                       + lax.broadcasted_iota(jnp.int32, (chunk_rows, LANE), 0))
                col = lax.broadcasted_iota(jnp.int32, (chunk_rows, LANE), 1)
                valid = (row < rows_valid) | ((row == rows_valid) & (col < rem_cols))
                p = jnp.where(valid, p, 0.0)
                t = jnp.where(valid, t, 0.0)
            # Whole-vreg grouping: axis-0 reduction is pure elementwise VPU adds.
            pb = p.reshape(chunk_rows // SUBLANES, SUBLANES, LANE)
            tb = t.reshape(chunk_rows // SUBLANES, SUBLANES, LANE)
            o_ref[0, 0, :, :] += jnp.sum(pb * tb, axis=0)   # intersection partials
            o_ref[0, 1, :, :] += jnp.sum(pb, axis=0)        # sum(sigmoid(preds))
            o_ref[0, 2, :, :] += jnp.sum(tb, axis=0)        # sum(targets)
            return carry

        lax.fori_loop(0, n_chunks, chunk, 0)

    if needs_mask:
        is_full = (logical_blk + 1) * block_rows <= rows_valid

        @pl.when(is_full)
        def _fast():
            accumulate(False)

        @pl.when(jnp.logical_not(is_full))
        def _masked():
            accumulate(True)
    else:
        accumulate(False)


def dice_loss(preds, targets, smooth=1e-6, *, target_block_bytes=TARGET_BLOCK_BYTES):
    """Pallas implementation of DiceLoss.forward.  Returns a scalar float32."""
    assert preds.shape == targets.shape
    n = int(preds.size)
    if n == 0:
        return jnp.asarray(0.0, jnp.float32)

    # Flatten in native dtype (free reshape; the f32 upcast happens in-kernel).
    p_flat = preds.reshape(-1)
    t_flat = targets.reshape(-1)

    rem = n % LANE
    if rem != 0:
        pad = LANE - rem                       # < 128 pad elements
        p_flat = jnp.pad(p_flat, (0, pad))
        t_flat = jnp.pad(t_flat, (0, pad))
    rows = p_flat.size // LANE
    p2 = p_flat.reshape(rows, LANE)
    t2 = t_flat.reshape(rows, LANE)

    # Bytes-based block sizing: ~4 MiB per stream buffer.
    itemsize = max(p2.dtype.itemsize, t2.dtype.itemsize)
    target_rows = max(SUBLANES, target_block_bytes // (LANE * itemsize))
    block_rows = min(target_rows, _round_up(rows, SUBLANES))
    if block_rows >= CHUNK_ROWS:
        block_rows = (block_rows // CHUNK_ROWS) * CHUNK_ROWS
        chunk_rows = CHUNK_ROWS
    else:
        block_rows = _round_up(block_rows, SUBLANES)
        chunk_rows = block_rows
    n_chunks = block_rows // chunk_rows

    blocks_total = pl.cdiv(rows, block_rows)
    num_core_chunks = 2 if blocks_total >= 2 else 1     # helps v7x; harmless on 1-TC chips
    blocks_per_core = pl.cdiv(blocks_total, num_core_chunks)
    has_phantom = num_core_chunks * blocks_per_core != blocks_total

    rows_valid = n // LANE            # number of fully-valid lane-dense rows
    rem_cols = n % LANE
    needs_mask = (rem_cols != 0) or (rows % block_rows != 0) or has_phantom

    if has_phantom:
        def in_idx(c, b):             # clamp phantom blocks onto a real block (masked to 0)
            return (jnp.minimum(c * blocks_per_core + b, blocks_total - 1), 0)
    else:
        def in_idx(c, b):
            return (c * blocks_per_core + b, 0)

    tile_spec = pl.BlockSpec((block_rows, LANE), in_idx)
    out_spec = pl.BlockSpec((1, 3, SUBLANES, LANE), lambda c, b: (c, 0, 0, 0))

    vmem_bytes = (2 * block_rows * LANE * (p2.dtype.itemsize + t2.dtype.itemsize)
                  + (8 << 20))
    vmem_limit = int(min(max(vmem_bytes, 16 << 20), 48 << 20))

    kernel = functools.partial(
        _dice_kernel,
        block_rows=block_rows, chunk_rows=chunk_rows, n_chunks=n_chunks,
        rows_valid=rows_valid, rem_cols=rem_cols, needs_mask=needs_mask)

    parts = pl.pallas_call(
        kernel,
        out_shape=jax.ShapeDtypeStruct((num_core_chunks, 3, SUBLANES, LANE),
                                       jnp.float32),
        grid_spec=pltpu.PrefetchScalarGridSpec(
            num_scalar_prefetch=0,
            grid=(num_core_chunks, blocks_per_core),
            in_specs=[tile_spec, tile_spec],
            out_specs=out_spec,
        ),
        compiler_params=pltpu.CompilerParams(
            dimension_semantics=("parallel", "arbitrary"),
            vmem_limit_bytes=vmem_limit,
        ),
    )(p2, t2)

    # Tiny cross-lane reduction + scalar epilogue in plain JAX.
    sums = jnp.sum(parts, axis=(0, 2, 3))                  # (3,)
    inter, p_sum, t_sum = sums[0], sums[1], sums[2]
    dice = (2.0 * inter + smooth) / (p_sum + t_sum + smooth)
    return 1.0 - dice


def dice_loss_ref(preds, targets, smooth=1e-6):
    p = jax.nn.sigmoid(preds.astype(jnp.float32))
    t = targets.astype(jnp.float32)
    inter = jnp.sum(p * t)
    dice = (2.0 * inter + smooth) / (jnp.sum(p) + jnp.sum(t) + smooth)
    return 1.0 - dice


if __name__ == "__main__":
    key = jax.random.PRNGKey(0)
    k1, k2, k3, k4, k5, k6 = jax.random.split(key, 6)

    # 1) Aligned NCHW shape (2048 elems): no pad, single full block, fast path.
    preds = jax.random.normal(k1, (2, 4, 16, 16), dtype=jnp.float32)
    targets = (jax.random.uniform(k2, (2, 4, 16, 16)) > 0.5).astype(jnp.float32)
    out = jax.block_until_ready(dice_loss(preds, targets))
    ref = jax.block_until_ready(dice_loss_ref(preds, targets))
    assert jnp.allclose(out, ref, atol=1e-5, rtol=1e-4), (out, ref)

    # 2) Ragged shape (1326 elems): <128-elem pad + in-kernel tail masking.
    preds_r = jax.random.normal(k3, (2, 3, 17, 13), dtype=jnp.float32)
    targets_r = (jax.random.uniform(k4, (2, 3, 17, 13)) > 0.5).astype(jnp.float32)
    out_r = jax.block_until_ready(dice_loss(preds_r, targets_r))
    ref_r = jax.block_until_ready(dice_loss_ref(preds_r, targets_r))
    assert jnp.allclose(out_r, ref_r, atol=1e-5, rtol=1e-4), (out_r, ref_r)

    # 3) Multi-block grid with 2 core-chunks, a partial edge block and a clamped
    #    phantom block (small block-size override to exercise the path at small shapes).
    preds_m = jax.random.normal(k5, (2, 4, 64, 64), dtype=jnp.float32)
    targets_m = (jax.random.uniform(k6, (2, 4, 64, 64)) > 0.5).astype(jnp.float32)
    out_m = jax.block_until_ready(
        dice_loss(preds_m, targets_m, target_block_bytes=56 * LANE * 4))
    ref_m = jax.block_until_ready(dice_loss_ref(preds_m, targets_m))
    assert jnp.allclose(out_m, ref_m, atol=1e-5, rtol=1e-4), (out_m, ref_m)

    print("KERNEL_OK")
</pallas_src>

<mosaic_0001>
module attributes {stable_mosaic.version = 11 : i64} {
  func.func @_dice_kernel(%arg0: i32, %arg1: i32, %arg2: memref<16x128xf32, #tpu.memory_space<vmem>>, %arg3: memref<16x128xf32, #tpu.memory_space<vmem>>, %arg4: memref<1x3x8x128xf32, #tpu.memory_space<vmem>>) attributes {dimension_semantics = [#tpu.dimension_semantics<parallel>, #tpu.dimension_semantics<arbitrary>], iteration_bounds = array<i64: 1, 1>, scalar_prefetch = 0 : i64, scratch_operands = 0 : i64, tpu.core_type = #tpu.core_type<tc>, window_params = [{transform_indices = @transform_0, window_bounds = array<i64: 16, 128>}, {transform_indices = @transform_1, window_bounds = array<i64: 16, 128>}, {transform_indices = @transform_2, window_bounds = array<i64: 1, 3, 8, 128>}]} {
    %c0_i32 = arith.constant 0 : i32
    %0 = arith.cmpi eq, %arg1, %c0_i32 : i32
    %1 = arith.extui %0 : i1 to i32
    %c0_i32_0 = arith.constant 0 : i32
    %2 = arith.cmpi ne, %1, %c0_i32_0 : i32
    scf.if %2 {
      %cst_30 = arith.constant 0.000000e+00 : f32
      %40 = vector.broadcast %cst_30 : f32 to vector<1x3x8x128xf32>
      %c0_31 = arith.constant 0 : index
      %c0_32 = arith.constant 0 : index
      %c0_33 = arith.constant 0 : index
      %c0_34 = arith.constant 0 : index
      %41 = vector.load %arg4[%c0_31, %c0_32, %c0_33, %c0_34] : memref<1x3x8x128xf32, #tpu.memory_space<vmem>>, vector<1x3x8x128xf32>
      tpu.vector_store %arg4[%c0_31, %c0_32, %c0_33, %c0_34], %40 {strides = array<i32>} : memref<1x3x8x128xf32, #tpu.memory_space<vmem>>, vector<1x3x8x128xf32>,
    } else {
    }
    %c0_i32_1 = arith.constant 0 : i32
    %c16_i32 = arith.constant 16 : i32
    %3 = arith.muli %c0_i32_1, %c16_i32 : i32
    %4 = tpu.assume_multiple %3, 16 : i32
    %5 = arith.index_cast %4 : i32 to index
    %c0 = arith.constant 0 : index
    %6 = vector.load %arg2[%5, %c0] : memref<16x128xf32, #tpu.memory_space<vmem>>, vector<16x128xf32>
    %7 = arith.index_cast %4 : i32 to index
    %c0_2 = arith.constant 0 : index
    %8 = vector.load %arg3[%7, %c0_2] : memref<16x128xf32, #tpu.memory_space<vmem>>, vector<16x128xf32>
    %cst = arith.constant 5.000000e-01 : f32
    %9 = vector.broadcast %cst : f32 to vector<16x128xf32>
    %10 = arith.mulf %9, %6 : vector<16x128xf32>
    %11 = math.tanh %10 : vector<16x128xf32>
    %cst_3 = arith.constant 5.000000e-01 : f32
    %12 = vector.broadcast %cst_3 : f32 to vector<16x128xf32>
    %13 = arith.mulf %12, %11 : vector<16x128xf32>
    %cst_4 = arith.constant 5.000000e-01 : f32
    %14 = vector.broadcast %cst_4 : f32 to vector<16x128xf32>
    %15 = arith.addf %13, %14 : vector<16x128xf32>
    %16 = vector.shape_cast %15 : vector<16x128xf32> to vector<2x8x128xf32>
    %17 = vector.shape_cast %8 : vector<16x128xf32> to vector<2x8x128xf32>
    %c0_5 = arith.constant 0 : index
    %c0_6 = arith.constant 0 : index
    %c0_7 = arith.constant 0 : index
    %c0_8 = arith.constant 0 : index
    %18 = vector.load %arg4[%c0_5, %c0_6, %c0_7, %c0_8] : memref<1x3x8x128xf32, #tpu.memory_space<vmem>>, vector<1x1x8x128xf32>
    %19 = vector.shape_cast %18 : vector<1x1x8x128xf32> to vector<8x128xf32>
    %20 = arith.mulf %16, %17 : vector<2x8x128xf32>
    %cst_9 = arith.constant dense<0.000000e+00> : vector<8x128xf32>
    %21 = vector.multi_reduction <add>, %20, %cst_9 [0] : vector<2x8x128xf32> to vector<8x128xf32>
    %22 = arith.addf %19, %21 : vector<8x128xf32>
    %c0_10 = arith.constant 0 : index
    %c0_11 = arith.constant 0 : index
    %c0_12 = arith.constant 0 : index
    %c0_13 = arith.constant 0 : index
    %23 = vector.load %arg4[%c0_10, %c0_11, %c0_12, %c0_13] : memref<1x3x8x128xf32, #tpu.memory_space<vmem>>, vector<1x1x8x128xf32>
    %24 = vector.shape_cast %23 : vector<1x1x8x128xf32> to vector<8x128xf32>
    %25 = vector.shape_cast %22 : vector<8x128xf32> to vector<1x1x8x128xf32>
    tpu.vector_store %arg4[%c0_10, %c0_11, %c0_12, %c0_13], %25 {strides = array<i32>} : memref<1x3x8x128xf32, #tpu.memory_space<vmem>>, vector<1x1x8x128xf32>,
    %c0_14 = arith.constant 0 : index
    %c1 = arith.constant 1 : index
    %c0_15 = arith.constant 0 : index
    %c0_16 = arith.constant 0 : index
    %26 = vector.load %arg4[%c0_14, %c1, %c0_15, %c0_16] : memref<1x3x8x128xf32, #tpu.memory_space<vmem>>, vector<1x1x8x128xf32>
    %27 = vector.shape_cast %26 : vector<1x1x8x128xf32> to vector<8x128xf32>
    %cst_17 = arith.constant dense<0.000000e+00> : vector<8x128xf32>
    %28 = vector.multi_reduction <add>, %16, %cst_17 [0] : vector<2x8x128xf32> to vector<8x128xf32>
    %29 = arith.addf %27, %28 : vector<8x128xf32>
    %c0_18 = arith.constant 0 : index
    %c1_19 = arith.constant 1 : index
    %c0_20 = arith.constant 0 : index
    %c0_21 = arith.constant 0 : index
    %30 = vector.load %arg4[%c0_18, %c1_19, %c0_20, %c0_21] : memref<1x3x8x128xf32, #tpu.memory_space<vmem>>, vector<1x1x8x128xf32>
    %31 = vector.shape_cast %30 : vector<1x1x8x128xf32> to vector<8x128xf32>
    %32 = vector.shape_cast %29 : vector<8x128xf32> to vector<1x1x8x128xf32>
    tpu.vector_store %arg4[%c0_18, %c1_19, %c0_20, %c0_21], %32 {strides = array<i32>} : memref<1x3x8x128xf32, #tpu.memory_space<vmem>>, vector<1x1x8x128xf32>,
    %c0_22 = arith.constant 0 : index
    %c2 = arith.constant 2 : index
    %c0_23 = arith.constant 0 : index
    %c0_24 = arith.constant 0 : index
    %33 = vector.load %arg4[%c0_22, %c2, %c0_23, %c0_24] : memref<1x3x8x128xf32, #tpu.memory_space<vmem>>, vector<1x1x8x128xf32>
    %34 = vector.shape_cast %33 : vector<1x1x8x128xf32> to vector<8x128xf32>
    %cst_25 = arith.constant dense<0.000000e+00> : vector<8x128xf32>
    %35 = vector.multi_reduction <add>, %17, %cst_25 [0] : vector<2x8x128xf32> to vector<8x128xf32>
    %36 = arith.addf %34, %35 : vector<8x128xf32>
    %c0_26 = arith.constant 0 : index
    %c2_27 = arith.constant 2 : index
    %c0_28 = arith.constant 0 : index
    %c0_29 = arith.constant 0 : index
    %37 = vector.load %arg4[%c0_26, %c2_27, %c0_28, %c0_29] : memref<1x3x8x128xf32, #tpu.memory_space<vmem>>, vector<1x1x8x128xf32>
    %38 = vector.shape_cast %37 : vector<1x1x8x128xf32> to vector<8x128xf32>
    %39 = vector.shape_cast %36 : vector<8x128xf32> to vector<1x1x8x128xf32>
    tpu.vector_store %arg4[%c0_26, %c2_27, %c0_28, %c0_29], %39 {strides = array<i32>} : memref<1x3x8x128xf32, #tpu.memory_space<vmem>>, vector<1x1x8x128xf32>,
    %c1_i32 = arith.constant 1 : i32
    return
  }
  func.func @transform_0(%arg0: i32, %arg1: i32) -> (i32, i32) {
    %c1_i32 = arith.constant 1 : i32
    %0 = arith.muli %arg0, %c1_i32 : i32
    %1 = arith.addi %0, %arg1 : i32
    %c0_i32 = arith.constant 0 : i32
    %c0_i32_0 = arith.constant 0 : i32
    return %1, %c0_i32 : i32, i32
  }
  func.func @transform_1(%arg0: i32, %arg1: i32) -> (i32, i32) {
    %c1_i32 = arith.constant 1 : i32
    %0 = arith.muli %arg0, %c1_i32 : i32
    %1 = arith.addi %0, %arg1 : i32
    %c0_i32 = arith.constant 0 : i32
    %c0_i32_0 = arith.constant 0 : i32
    return %1, %c0_i32 : i32, i32
  }
  func.func @transform_2(%arg0: i32, %arg1: i32) -> (i32, i32, i32, i32) {
    %c0_i32 = arith.constant 0 : i32
    %c0_i32_0 = arith.constant 0 : i32
    %c0_i32_1 = arith.constant 0 : i32
    %c0_i32_2 = arith.constant 0 : i32
    return %arg0, %c0_i32, %c0_i32_0, %c0_i32_1 : i32, i32, i32, i32
  }
}

</mosaic_0001>

<llo_original>
// kernel: tpu_custom_call.1
$region0: #{tpu_custom_call.1}
  #allocation0 [shape = 'u32[]', space=smem, size = 0x4, offset = 0x4, fixed_abs, tag = 'smem constant byte address 0x4 - core index']
  #allocation1 [shape = 'u32[144,128]{1,0:T(1,128)}', space=vmem, size = 0x12000, scoped, tag = 'internal scratch']
  %s0 = inlined_call_operand.hbm [shape: f32[16,128], index: 0, kind: input, shape index: {}]
  %s1 = inlined_call_operand.hbm [shape: f32[16,128], index: 1, kind: input, shape index: {}]
  %s2 = inlined_call_operand.hbm [shape: f32[1,3,8,128], index: 2, kind: output, shape index: {}]
  %s3 = sld [smem:[#allocation0]]
  $region30: #{tpu_custom_call.1} parent=0
    _
  %s5 = ssub.s32 1, %s3
  %s6 = scalar_select 0, %s5, %s3
  $region1: #{tpu_custom_call.1} parent=0
    #allocation2 [shape = 'u8[8192]{0}', space=vmem, size = 0x2000, scoped, tag = 'input window, operand 0, single buffered']
    #allocation3 [shape = 's32[1]{0}', space=sflag, size = 0x4, scoped, tag = 'scoped memory for tpu_custom_call.1']
    #allocation4 [shape = 's32[1]{0}', space=sflag, size = 0x4, scoped, tag = 'scoped memory for tpu_custom_call.1']
    #allocation5 [shape = 'u8[8192]{0}', space=vmem, size = 0x2000, scoped, tag = 'input window, operand 1, single buffered']
    #allocation6 [shape = 's32[1]{0}', space=sflag, size = 0x4, scoped, tag = 'scoped memory for tpu_custom_call.1']
    #allocation7 [shape = 'u8[12288]{0}', space=vmem, size = 0x3000, scoped, tag = 'output window, operand 0, single buffered']
    %7 = vsyncpa [#allocation3], 0
    %8 = vsyncpa [#allocation6], 0
    %9 = vsyncpa [#allocation4], 0
    // Predicated region
    $region2: #{tpu_custom_call.1} parent=1 // pred_check
      _
    $region3: #{tpu_custom_call.1} parent=1 // pred_check_branch
      %11 = sbr.rel (0) target = $region5
    $region4: #{tpu_custom_call.1} parent=1 // pred_region
      %s12 = sadd.s32 0, 0
      %s13 = smul.u32 2, %s12
      %s15 = ssub.s32 256, 256
      %16 = vsyncadd [#allocation3], %s15
      %s17 = smul.addr %s13, 128
      %s18 = scalar_lea.hbm %s0, %s17
      %s19 = sshll.u32 [#allocation2], 4
      %s20 = int_to_ptr.vmem [resolvable:$true] %s19
      %25 = dma.hbm_to_vmem [thread:$0]  %s18, 256, %s20, [#allocation3], 128, 128, 8
    $region5: #{tpu_custom_call.1} parent=1 // pred_fallthru
      _
    // Predicated region
    $region6: #{tpu_custom_call.1} parent=1 // pred_check
      _
    $region7: #{tpu_custom_call.1} parent=1 // pred_check_branch
      %27 = sbr.rel (0) target = $region9
    $region8: #{tpu_custom_call.1} parent=1 // pred_region
      %s28 = sadd.s32 0, 0
      %s29 = smul.u32 2, %s28
      %s31 = ssub.s32 256, 256
      %32 = vsyncadd [#allocation6], %s31
      %s33 = smul.addr %s29, 128
      %s34 = scalar_lea.hbm %s1, %s33
      %s35 = sshll.u32 [#allocation5], 4
      %s36 = int_to_ptr.vmem [resolvable:$true] %s35
      %41 = dma.hbm_to_vmem [thread:$0]  %s34, 256, %s36, [#allocation6], 128, 128, 8
    $region9: #{tpu_custom_call.1} parent=1 // pred_fallthru
      _
    // Predicated region
    $region10: #{tpu_custom_call.1} parent=1 // pred_check
      _
    $region11: #{tpu_custom_call.1} parent=1 // pred_check_branch
      %43 = sbr.rel (0) target = $region13
    $region12: #{tpu_custom_call.1} parent=1 // pred_region
      %44 = dma.done [#allocation3], 256
    $region13: #{tpu_custom_call.1} parent=1 // pred_fallthru
      _
    // Predicated region
    $region14: #{tpu_custom_call.1} parent=1 // pred_check
      _
    $region15: #{tpu_custom_call.1} parent=1 // pred_check_branch
      %46 = sbr.rel (0) target = $region17
    $region16: #{tpu_custom_call.1} parent=1 // pred_region
      %47 = dma.done [#allocation6], 256
    $region17: #{tpu_custom_call.1} parent=1 // pred_fallthru
      _
    %s48 = sadd.s32 0, 0
    %s49 = smul.u32 2, %s48
    %s50 = sadd.s32 0, 0
    %s51 = smul.u32 2, %s50
    %p52 = scmp.eq.s32.totalorder 0, 0
    // Predicated region
    $region18: #{tpu_custom_call.1} parent=1 // pred_check
      %p53 = pneg %p52
    $region19: #{tpu_custom_call.1} parent=1 // pred_check_branch
      %55 = sbr.rel (%p53) target = $region21
    $region20: #{tpu_custom_call.1} parent=1 // pred_region
      %56 = vst [vmem:[#allocation7] sm:$0xff] 0.0
      %57 = vst [vmem:[#allocation7 + $0x8] sm:$0xff] 0.0
      %58 = vst [vmem:[#allocation7 + $0x10] sm:$0xff] 0.0
    $region21: #{tpu_custom_call.1} parent=1 // pred_fallthru
      _
    %v59 = vld [vmem:[#allocation2] sm:$0xff]
    %v60 = vld [vmem:[#allocation2 + $0x8] sm:$0xff]
    %v61 = vld [vmem:[#allocation5] sm:$0xff]
    %v62 = vld [vmem:[#allocation5 + $0x8] sm:$0xff]
    %v63 = vmul.f32 %v59, 0.5
    %v64 = vmul.f32 %v60, 0.5
    %v65 = vtanh.pop %v63
    %v66 = vtanh.pop %v64
    %v67 = vmul.f32 %v65, 0.5
    %v68 = vmul.f32 %v66, 0.5
    %v69 = vadd.f32 %v67, 0.5
    %v70 = vadd.f32 %v68, 0.5
    %v71 = vld [vmem:[#allocation7] sm:$0xff]
    %v72 = vmul.f32 %v69, %v61
    %v73 = vmul.f32 %v70, %v62
    %v74 = vadd.f32 %v72, %v73
    %v75 = vadd.f32 %v71, %v74
    %76 = vst [vmem:[#allocation7] sm:$0xff] %v75
    %s77 = scalar_lea.vmem [#allocation7], 8
    %v78 = vld [vmem:[%s77] sm:$0xff]
    %v79 = vadd.f32 %v69, %v70
    %v80 = vadd.f32 %v78, %v79
    %81 = vst [vmem:[%s77] sm:$0xff] %v80
    %s82 = scalar_lea.vmem [#allocation7], 16
    %v83 = vld [vmem:[%s82] sm:$0xff]
    %v84 = vadd.f32 %v61, %v62
    %v85 = vadd.f32 %v83, %v84
    %86 = vst [vmem:[%s82] sm:$0xff] %v85
    // Predicated region
    $region22: #{tpu_custom_call.1} parent=1 // pred_check
      _
    $region23: #{tpu_custom_call.1} parent=1 // pred_check_branch
      %88 = sbr.rel (0) target = $region25
    $region24: #{tpu_custom_call.1} parent=1 // pred_region
      %s90 = ssub.s32 384, 384
      %91 = vsyncadd [#allocation4], %s90
      %s92 = sshll.u32 [#allocation7], 4
      %s93 = int_to_ptr.vmem [resolvable:$true] %s92
      %98 = dma.vmem_to_hbm [thread:$0]  %s93, 384, %s2, [#allocation4], 128, 128, 8
    $region25: #{tpu_custom_call.1} parent=1 // pred_fallthru
      _
    // Predicated region
    $region26: #{tpu_custom_call.1} parent=1 // pred_check
      _
    $region27: #{tpu_custom_call.1} parent=1 // pred_check_branch
      %100 = sbr.rel (0) target = $region29
    $region28: #{tpu_custom_call.1} parent=1 // pred_region
      %101 = dma.done [#allocation4], 384
    $region29: #{tpu_custom_call.1} parent=1 // pred_fallthru
      _
    %102 = vsyncpa [#allocation3], 1
    %103 = vsyncpa [#allocation6], 1
    %104 = vsyncpa [#allocation4], 1

</llo_original>
